<compile_context>
chip_gen: v7x
topology: tpu7x:2x2x1
jax: 0.10.0
libtpu: 0.0.40
codegen_flags: <defaults>
</compile_context>

<pallas_src>
import functools

import jax
import jax.numpy as jnp
from jax.experimental import pallas as pl
from jax.experimental.pallas import tpu as pltpu


def _round_up(x, m):
    return ((x + m - 1) // m) * m


def _patch_embed_kernel(x_ref, w_ref, b_ref, o_ref):
    # x_ref: (tm, K)  w_ref: (K, Ep)  b_ref: (1, Ep)  o_ref: (tm, Ep)
    acc = jnp.dot(x_ref[...], w_ref[...], preferred_element_type=jnp.float32)
    o_ref[...] = (acc + b_ref[...]).astype(o_ref.dtype)


def patch_embed(x, weight, bias, patch_size, *, tm_target=1024,
                out_dtype=None, use_bf16_compute=True):
    """x: (B, 3, H, W) NCHW; weight: (E, 3, p, p); bias: (E,). Returns (B, N, E).

    out_dtype: defaults to x.dtype (matches the PyTorch module); pass
      jnp.bfloat16 to cut the dominant output-writeback HBM stream when the
      downstream consumer is bf16 (v6e/v7x win; semantics change vs PyTorch).
    use_bf16_compute: bf16 MXU inputs with f32 accumulation (set False for
      bit-closer f32 numerics at ~2x the activation/weight HBM traffic).
    """
    B, C, H, W = x.shape
    if C != 3:
        raise ValueError(f"Expected 3 channels, got {C}")
    p = patch_size
    if H % p != 0 or W % p != 0:
        raise ValueError(
            f"Image dimensions {(H, W)} must be divisible by patch_size {p}")
    nh, nw = H // p, W // p
    N = nh * nw
    E = weight.shape[0]
    K = C * p * p
    M = B * N

    out_dtype = jnp.dtype(x.dtype if out_dtype is None else out_dtype)
    compute_dtype = (jnp.bfloat16
                     if (use_bf16_compute and x.dtype == jnp.float32)
                     else x.dtype)
    compute_isz = jnp.dtype(compute_dtype).itemsize
    out_isz = out_dtype.itemsize

    # Only lane-pad the embedding dim, and only when needed. The activation K
    # stream dominates HBM traffic and stays un-padded (block last dim equal to
    # the array dim satisfies the (8,128) rule; MXU under-utilization at K<128
    # is irrelevant in this memory-bound regime).
    Ep = E if E % 128 == 0 else _round_up(E, 128)

    # Row-tile selection: large tiles amortize the ~0.35us/step grid overhead;
    # keep >=2 grid steps when there is enough work so both v7x TensorCores
    # (and megacore on v5e/v6e) get fed via the "parallel" axis.
    if M > tm_target:
        tm = tm_target
    elif M > 256:
        tm = _round_up(pl.cdiv(M, 2), 16)
    else:
        tm = M  # single block; block dim == array dim satisfies the 8-row rule

    def _vmem_bytes(t):
        return (2 * t * K * compute_isz      # double-buffered activation tile
                + K * Ep * compute_isz       # resident weight (single buffer)
                + Ep * 4                     # bias row
                + 2 * t * Ep * out_isz)      # double-buffered output tile

    # Keep the footprint well under v7x's 64 MiB per-TensorCore physical VMEM.
    while tm > 128 and _vmem_bytes(tm) > 40 * 1024 * 1024:
        tm = _round_up(tm // 2, 16)
    grid_m = pl.cdiv(M, tm)
    vmem_limit = int(min(48 * 1024 * 1024,
                         max(16 * 1024 * 1024,
                             _vmem_bytes(tm) + 8 * 1024 * 1024)))

    # Patchify: (B,C,H,W) -> (B, nh, nw, C, p, p) -> (M, K), (c, kh, kw) order.
    # Cast BEFORE the relayout so a materialized copy is 2-byte bf16.
    # TODO(synk): verify in post-optimization HLO that this relayout fuses into
    # the pallas_call input DMA (allow_input_fusion); if it materializes, accept
    # a patch-major input layout from the caller or move the relayout in-kernel
    # via manual DMA to drop one full activation HBM round-trip.
    patches = (
        x.astype(compute_dtype)
        .reshape(B, C, nh, p, nw, p)
        .transpose(0, 2, 4, 1, 3, 5)
        .reshape(M, K)
    )

    # Conv weight (E, C, p, p) -> (K, E[p]), flattened in the same (c,kh,kw) order.
    w2 = weight.reshape(E, K).T.astype(compute_dtype)
    b2 = bias.astype(jnp.float32)
    if Ep != E:
        w2 = jnp.pad(w2, ((0, 0), (0, Ep - E)))
        b2 = jnp.pad(b2, (0, Ep - E))
    b2 = b2.reshape(1, Ep)

    bytes_accessed = (M * K * compute_isz      # activation stream
                      + K * Ep * compute_isz   # resident projection weight
                      + Ep * 4                 # bias row
                      + M * Ep * out_isz)      # output writeback

    out = pl.pallas_call(
        _patch_embed_kernel,
        out_shape=jax.ShapeDtypeStruct((M, Ep), out_dtype),
        grid=(grid_m,),
        in_specs=[
            pl.BlockSpec((tm, K), lambda i: (i, 0)),     # patch-row tile
            pl.BlockSpec((K, Ep), lambda i: (0, 0),      # full projection weight
                         pipeline_mode=pl.Buffered(1)),  #   grid-invariant: 1 buffer
            pl.BlockSpec((1, Ep), lambda i: (0, 0),      # bias row
                         pipeline_mode=pl.Buffered(1)),
        ],
        out_specs=pl.BlockSpec((tm, Ep), lambda i: (i, 0)),
        compiler_params=pltpu.CompilerParams(
            dimension_semantics=("parallel",),
            vmem_limit_bytes=vmem_limit,
            allow_input_fusion=[True, False, False],
        ),
        cost_estimate=pl.CostEstimate(
            flops=2 * M * K * E,
            transcendentals=0,
            bytes_accessed=bytes_accessed,
        ),
    )(patches, w2, b2)

    if Ep != E:
        # Uncommon path (E not a lane multiple): costs one output copy.
        out = out[:, :E]
    return out.reshape(B, N, E)


if __name__ == "__main__":
    # Small shapes consistent with the module semantics (3 input channels).
    B, C, H, W = 2, 3, 16, 16
    patch_size = 4
    embed_dim = 128

    key = jax.random.PRNGKey(0)
    kx, kw, kb = jax.random.split(key, 3)
    x = jax.random.normal(kx, (B, C, H, W), dtype=jnp.float32)
    # Deterministic synthetic parameters (Conv2d weight/bias shapes).
    weight = (
        jax.random.normal(kw, (embed_dim, C, patch_size, patch_size),
                          dtype=jnp.float32) * 0.02
    )
    bias = jax.random.normal(kb, (embed_dim,), dtype=jnp.float32) * 0.02

    fn = jax.jit(functools.partial(patch_embed, patch_size=patch_size))
    out = fn(x, weight, bias)
    out = jax.block_until_ready(out)

    # Sanity check against XLA's conv (same semantics as nn.Conv2d stride=p).
    ref = jax.lax.conv_general_dilated(
        x, weight,
        window_strides=(patch_size, patch_size),
        padding="VALID",
        dimension_numbers=("NCHW", "OIHW", "NCHW"),
    ) + bias.reshape(1, embed_dim, 1, 1)
    ref = ref.reshape(B, embed_dim, -1).transpose(0, 2, 1)

    assert out.shape == (B, (H // patch_size) * (W // patch_size), embed_dim)
    # bf16 matmul inputs with f32 accumulation -> loosened tolerance.
    assert jnp.allclose(out, ref, atol=1e-2, rtol=1e-2), float(
        jnp.max(jnp.abs(out - ref))
    )

    print("KERNEL_OK")
</pallas_src>

<mosaic_0001>
module attributes {stable_mosaic.version = 11 : i64} {
  func.func @_patch_embed_kernel(%arg0: i32, %arg1: memref<32x48xbf16, #tpu.memory_space<vmem>>, %arg2: memref<48x128xbf16, #tpu.memory_space<vmem>>, %arg3: memref<1x128xf32, #tpu.memory_space<vmem>>, %arg4: memref<32x128xf32, #tpu.memory_space<vmem>>) attributes {dimension_semantics = [#tpu.dimension_semantics<parallel>], iteration_bounds = array<i64: 1>, scalar_prefetch = 0 : i64, scratch_operands = 0 : i64, tpu.core_type = #tpu.core_type<tc>, window_params = [{transform_indices = @transform_0, window_bounds = array<i64: 32, 48>}, {pipeline_mode = #tpu.pipeline_mode<synchronous>, transform_indices = @transform_1, window_bounds = array<i64: 48, 128>}, {pipeline_mode = #tpu.pipeline_mode<synchronous>, transform_indices = @transform_2, window_bounds = array<i64: 1, 128>}, {transform_indices = @transform_3, window_bounds = array<i64: 32, 128>}]} {
    %c0 = arith.constant 0 : index
    %c0_0 = arith.constant 0 : index
    %0 = vector.load %arg1[%c0, %c0_0] : memref<32x48xbf16, #tpu.memory_space<vmem>>, vector<32x48xbf16>
    %c0_1 = arith.constant 0 : index
    %c0_2 = arith.constant 0 : index
    %1 = vector.load %arg2[%c0_1, %c0_2] : memref<48x128xbf16, #tpu.memory_space<vmem>>, vector<48x128xbf16>
    %cst = arith.constant dense<0.000000e+00> : vector<32x128xf32>
    %2 = tpu.matmul %0, %1, %cst {dimension_numbers = #tpu.dot_dimension_numbers<[1], [0], [0], [1], [0, 0, 1, 1], [], []>} : vector<32x48xbf16>, vector<48x128xbf16>, vector<32x128xf32> -> vector<32x128xf32>
    %c0_3 = arith.constant 0 : index
    %c0_4 = arith.constant 0 : index
    %3 = vector.load %arg3[%c0_3, %c0_4] : memref<1x128xf32, #tpu.memory_space<vmem>>, vector<1x128xf32>
    %4 = vector.broadcast %3 : vector<1x128xf32> to vector<32x128xf32>
    %5 = arith.addf %2, %4 : vector<32x128xf32>
    %c0_5 = arith.constant 0 : index
    %c0_6 = arith.constant 0 : index
    %6 = vector.load %arg4[%c0_5, %c0_6] : memref<32x128xf32, #tpu.memory_space<vmem>>, vector<32x128xf32>
    tpu.vector_store %arg4[%c0_5, %c0_6], %5 {strides = array<i32>} : memref<32x128xf32, #tpu.memory_space<vmem>>, vector<32x128xf32>,
    return
  }
  func.func @transform_0(%arg0: i32) -> (i32, i32) {
    %c0_i32 = arith.constant 0 : i32
    %c0_i32_0 = arith.constant 0 : i32
    return %arg0, %c0_i32 : i32, i32
  }
  func.func @transform_1(%arg0: i32) -> (i32, i32) {
    %c0_i32 = arith.constant 0 : i32
    %c0_i32_0 = arith.constant 0 : i32
    %c0_i32_1 = arith.constant 0 : i32
    return %c0_i32, %c0_i32_0 : i32, i32
  }
  func.func @transform_2(%arg0: i32) -> (i32, i32) {
    %c0_i32 = arith.constant 0 : i32
    %c0_i32_0 = arith.constant 0 : i32
    %c0_i32_1 = arith.constant 0 : i32
    return %c0_i32, %c0_i32_0 : i32, i32
  }
  func.func @transform_3(%arg0: i32) -> (i32, i32) {
    %c0_i32 = arith.constant 0 : i32
    %c0_i32_0 = arith.constant 0 : i32
    return %arg0, %c0_i32 : i32, i32
  }
}

</mosaic_0001>

<llo_original>
// kernel: patch_embed.1
$region0: #{patch_embed.1}
  #allocation0 [shape = 'u32[]', space=smem, size = 0x4, offset = 0x4, fixed_abs, tag = 'smem constant byte address 0x4 - core index']
  #allocation1 [shape = 'u32[144,128]{1,0:T(1,128)}', space=vmem, size = 0x12000, scoped, tag = 'internal scratch']
  %s0 = inlined_call_operand.vmem [shape: bf16[32,48], index: 0, kind: input, shape index: {}]
  %s1 = inlined_call_operand.vmem [shape: bf16[48,128], index: 1, kind: input, shape index: {}]
  %s2 = inlined_call_operand.vmem [shape: f32[1,128], index: 2, kind: input, shape index: {}]
  %s3 = inlined_call_operand.hbm [shape: f32[32,128], index: 3, kind: output, shape index: {}]
  %s4 = sld [smem:[#allocation0]]
  $region22: #{patch_embed.1} parent=0
    _
  %s6 = ssub.s32 1, %s4
  %s7 = scalar_select 0, %s6, %s4
  $region1: #{patch_embed.1} parent=0
    #allocation2 [shape = 'u8[16384]{0}', space=vmem, size = 0x4000, scoped, tag = 'output window, operand 0, single buffered']
    #allocation3 [shape = 's32[1]{0}', space=sflag, size = 0x4, scoped, tag = 'scoped memory for patch_embed.1']
    %8 = vsyncpa [#allocation3], 0
    // Predicated region
    $region2: #{patch_embed.1} parent=1 // pred_check
      _
    $region3: #{patch_embed.1} parent=1 // pred_check_branch
      %10 = sbr.rel (0) target = $region5
    $region4: #{patch_embed.1} parent=1 // pred_region
      _
    $region5: #{patch_embed.1} parent=1 // pred_fallthru
      _
    // Predicated region
    $region6: #{patch_embed.1} parent=1 // pred_check
      _
    $region7: #{patch_embed.1} parent=1 // pred_check_branch
      %12 = sbr.rel (0) target = $region9
    $region8: #{patch_embed.1} parent=1 // pred_region
      _
    $region9: #{patch_embed.1} parent=1 // pred_fallthru
      _
    // Predicated region
    $region10: #{patch_embed.1} parent=1 // pred_check
      _
    $region11: #{patch_embed.1} parent=1 // pred_check_branch
      %14 = sbr.rel (0) target = $region13
    $region12: #{patch_embed.1} parent=1 // pred_region
      _
    $region13: #{patch_embed.1} parent=1 // pred_fallthru
      _
    %v16 = vld [vmem:[%s0] sm:$0xf]
    %v17 = vld [vmem:[%s0 + $0x4] sm:$0xf]
    %v18 = vld [vmem:[%s0 + $0x8] sm:$0xf]
    %v19 = vld [vmem:[%s0 + $0xc] sm:$0xf]
    %v20 = vld [vmem:[%s1] sm:$0xf]
    %v21 = vld [vmem:[%s1 + $0x4] sm:$0xf]
    %v22 = vld [vmem:[%s1 + $0x8] sm:$0xf]
    %v23 = vld [vmem:[%s1 + $0xc] sm:$0xf]
    %v24 = vld [vmem:[%s1 + $0x10] sm:$0xf]
    %v25 = vld [vmem:[%s1 + $0x14] sm:$0xf]
    %v26 = vld [vmem:[%s2] sm:$0x1]
    %v28 = vlaneseq
    %v29 = vshrl.u32 %v28, 7
    %v30 = vsub.s32 0, %v29
    %v31 = vrot.slane %v26, %v30
    %v37 = vunpack.c.l.b16 %v16
    %v38 = vunpack.c.l.b16 %v17
    %v39 = vunpack.c.l.b16 %v18
    %v40 = vunpack.c.l.b16 %v19
    %v41 = vpack.c.b16 %v38, %v37
    %v42 = vpack.c.b16 %v40, %v39
    %v49 = vunpack.c.l.b16 %v20
    %v50 = vunpack.c.l.b16 %v21
    %v51 = vunpack.c.l.b16 %v22
    %v52 = vunpack.c.l.b16 %v23
    %v53 = vunpack.c.l.b16 %v24
    %v54 = vunpack.c.l.b16 %v25
    %v55 = vpack.c.b16 %v50, %v49
    %v56 = vpack.c.b16 %v52, %v51
    %v57 = vpack.c.b16 %v54, %v53
    %vm61 = vcmask 392192
    %v63 = vsel %vm61, %v41, 0
    %v66 = vsel %vm61, %v42, 0
    %68 = vmatprep.subr.bf16.mxu0 0
    %69 = vmatpush1.bf16.msra.mxu0 %v55
    %70 = vmatprep.subr.bf16.mxu0 0
    %71 = vmatpush1.bf16.msra.mxu0 %v56
    %72 = vmatprep.subr.bf16.mxu0 0
    %73 = vmatpush1.bf16.msra.mxu0 %v57
    %74 = vmatprep.subr.bf16.mxu0 0
    %75 = vmatpush1.bf16.msra.mxu0 0
    %76 = vmatprep.subr.bf16.mxu0 0
    %77 = vmatpush1.bf16.msra.mxu0 0
    %78 = vmatprep.subr.bf16.mxu0 0
    %79 = vmatpush1.bf16.msra.mxu0 0
    %80 = vmatprep.subr.bf16.mxu0 0
    %81 = vmatpush1.bf16.msra.mxu0 0
    %82 = vmatprep.subr.bf16.mxu0 0
    %83 = vmatpush1.bf16.msra.mxu0 0
    %84 = vmatprep.subr.bf16.mxu0 0
    %85 = vmatpush1.bf16.msra.mxu0 0
    %86 = vmatprep.subr.bf16.mxu0 0
    %87 = vmatpush1.bf16.msra.mxu0 0
    %88 = vmatprep.subr.bf16.mxu0 0
    %89 = vmatpush1.bf16.msra.mxu0 0
    %90 = vmatprep.subr.bf16.mxu0 0
    %91 = vmatpush1.bf16.msra.mxu0 0
    %92 = vmatprep.subr.bf16.mxu0 0
    %93 = vmatpush1.bf16.msra.mxu0 0
    %94 = vmatprep.subr.bf16.mxu0 0
    %95 = vmatpush1.bf16.msra.mxu0 0
    %96 = vmatprep.subr.bf16.mxu0 0
    %97 = vmatpush1.bf16.msra.mxu0 0
    %98 = vmatprep.subr.bf16.mxu0 0
    %99 = vmatpush1.bf16.msra.mxu0 0
    %100 = vmatprep.mubr.bf16.mxu0 0
    %101 = vmatmul.mubr.bf16.gmra.mrb[0].mxu0 %v63
    %v102 = vpop.f32.mrb[0].mxu0
    %v103 = vadd.f32 %v31, %v102
    %v104 = vpop.f32.mrb[0].mxu0
    %v105 = vpop.f32.mrb[0].mxu0
    %v106 = vadd.f32 %v31, %v105
    %v107 = vpop.f32.mrb[0].mxu0
    %108 = vmatprep.mubr.bf16.mxu0 0
    %109 = vmatmul.mubr.bf16.gmra.mrb[0].mxu0 %v66
    %v110 = vpop.f32.mrb[0].mxu0
    %v111 = vadd.f32 %v31, %v110
    %v112 = vpop.f32.mrb[0].mxu0
    %v113 = vpop.f32.mrb[0].mxu0
    %v114 = vadd.f32 %v31, %v113
    %v115 = vpop.f32.mrb[0].mxu0
    %116 = vdwg.mxu0
    %117 = vst [vmem:[#allocation2] sm:$0xff] %v103
    %118 = vst [vmem:[#allocation2 + $0x8] sm:$0xff] %v106
    %119 = vst [vmem:[#allocation2 + $0x10] sm:$0xff] %v111
    %120 = vst [vmem:[#allocation2 + $0x18] sm:$0xff] %v114
    // Predicated region
    $region14: #{patch_embed.1} parent=1 // pred_check
      _
    $region15: #{patch_embed.1} parent=1 // pred_check_branch
      %122 = sbr.rel (0) target = $region17
    $region16: #{patch_embed.1} parent=1 // pred_region
      %s124 = ssub.s32 512, 512
      %125 = vsyncadd [#allocation3], %s124
      %s126 = sshll.u32 [#allocation2], 4
      %s127 = int_to_ptr.vmem [resolvable:$true] %s126
      %132 = dma.vmem_to_hbm [thread:$0]  %s127, 512, %s3, [#allocation3], 128, 128, 8
    $region17: #{patch_embed.1} parent=1 // pred_fallthru
      _
    // Predicated region
    $region18: #{patch_embed.1} parent=1 // pred_check
      _
    $region19: #{patch_embed.1} parent=1 // pred_check_branch
      %134 = sbr.rel (0) target = $region21
    $region20: #{patch_embed.1} parent=1 // pred_region
      %135 = dma.done [#allocation3], 512
    $region21: #{patch_embed.1} parent=1 // pred_fallthru
      _
    %136 = vsyncpa [#allocation3], 1

</llo_original>
